<compile_context>
chip_gen: v7x
topology: tpu7x:2x2x1
jax: 0.10.0
libtpu: 0.0.40
codegen_flags: <defaults>
</compile_context>

<pallas_src>
import functools

import jax
import jax.numpy as jnp
from jax.experimental import pallas as pl
from jax.experimental.pallas import tpu as pltpu


def _se_kernel(x_ref, w1f_ref, b1_ref, w2t_ref, expand_ref, o_ref, *, k):
    """One grid step: nb whole images -> per-channel gate -> scaled output block."""
    x = x_ref[...]                                                 # (nb, R, L), input dtype

    # Spatial sum per (image, folded row), accumulated in f32.
    row_sum = jnp.sum(x.astype(jnp.float32), axis=-1)              # (nb, R)

    # AdaptiveAvgPool2d(1) + Conv1x1(no bias) + folded BatchNorm:
    # 1/HW and the row->channel fold are pre-folded into w1f on the host.
    h = jnp.dot(row_sum, w1f_ref[...],
                preferred_element_type=jnp.float32) + b1_ref[...]  # (nb, E)
    h = jnp.maximum(h, 0.0)                                        # ReLU

    # Conv1x1 (no bias) + Hardsigmoid.
    y = jnp.dot(h, w2t_ref[...], preferred_element_type=jnp.float32)  # (nb, C)
    gate = jnp.clip(y * (1.0 / 6.0) + 0.5, 0.0, 1.0)

    # Expand the per-channel gate over the k folded rows of each channel.
    if k == 1:
        gate_rows = gate                                           # (nb, R == C)
    else:
        gate_rows = jnp.dot(gate, expand_ref[...],
                            preferred_element_type=jnp.float32)    # (nb, R)

    # Apply the f32 gate to the full block; cast once on the way out.
    o_ref[...] = (x.astype(jnp.float32) * gate_rows[:, :, None]).astype(o_ref.dtype)


def _pick_fold(C, HW):
    """Divisor k of HW making the (R=C*k, L=HW/k) view as lane/sublane-dense as possible."""
    best_score, best_k = None, 1
    for k in range(1, HW + 1):
        if HW % k:
            continue
        R, L = C * k, HW // k
        lane_waste = (pl.cdiv(L, 128) * 128) / L    # 1.0 == unmasked, lane-dense stores
        sub_waste = (pl.cdiv(R, 8) * 8) / R         # 1.0 == full vreg sublane occupancy
        score = (lane_waste * sub_waste, lane_waste, k)   # prefer dense, then longer rows
        if best_score is None or score < best_score:
            best_score, best_k = score, k
    return best_k


def _vmem_capacity_bytes():
    try:
        info = pltpu.get_tpu_info()
        cap = getattr(info, "vmem_capacity_bytes", None)
        if cap:
            return int(cap)
    except Exception:
        pass
    return 64 << 20   # conservative default: smallest per-core VMEM (v7x)


def _pick_batch_and_vmem(N, R, L, itemsize, weight_bytes):
    """Images per grid step + vmem_limit_bytes, generation-aware."""
    cap = _vmem_capacity_bytes()
    large_vmem = cap >= (96 << 20)                    # v5e / v6e: 128 MiB per core
    budget = min((cap * 3) // 4, 100 << 20)           # ~96 MiB big parts, 48 MiB on v7x
    target_block = (8 << 20) if large_vmem else (4 << 20)

    per_image = R * L * itemsize
    # 2x(in block) + 2x(out block) double-buffered + weights + headroom <= budget.
    fit_nb = max(1, (budget - weight_bytes - (4 << 20)) // (4 * per_image))
    nb = int(max(1, min(N, fit_nb, max(1, target_block // per_image))))

    # Keep >= min(4, N) grid steps: both v7x TensorCores get work and each core
    # keeps >= 2 steps so prefetch(i+1)/writeback(i-1) overlap with compute.
    min_steps = min(4, N)
    if min_steps > 1:
        nb = min(nb, max(1, N // min_steps))

    block_bytes = nb * per_image
    vmem_limit = int(min(budget, max(32 << 20, 4 * block_bytes + weight_bytes + (4 << 20))))
    return nb, vmem_limit


def se_module(x, w1, bn_scale, bn_bias, w2):
    """SEModule forward.  x: (N,C,H,W); w1: (E,C); w2: (C,E); bn_*: (E,) or (E,1)."""
    N, C, H, W = x.shape
    E = w1.shape[0]
    HW = H * W

    # Fold eval-mode BatchNorm into the bias-free first 1x1 conv.
    scale = jnp.reshape(bn_scale, (E,)).astype(jnp.float32)
    bias = jnp.reshape(bn_bias, (1, E)).astype(jnp.float32)        # (1, E)
    w1t = (w1.astype(jnp.float32) * scale[:, None]).T              # (C, E)
    w2t = w2.astype(jnp.float32).T                                 # (E, C)

    # Lane/sublane-dense view of the activations: (N, R=C*k, L=HW/k) (pure reshape).
    k = _pick_fold(C, HW)
    R, L = C * k, HW // k
    x3 = x.reshape(N, R, L)

    # Fold the pooling fold matrix and 1/HW into the first conv:
    #   h[n] = (sum over lanes of x3[n]) @ w1f + bias,  w1f[r] = w1t[r // k] / HW.
    w1f = jnp.repeat(w1t, k, axis=0) * (1.0 / HW)                  # (R, E)
    # Gate expansion (channel -> its k rows); identity when k == 1 (skipped in-kernel).
    expand = (jnp.arange(R)[None, :] // k
              == jnp.arange(C)[:, None]).astype(jnp.float32)       # (C, R)

    weight_bytes = 4 * (R * E + E + E * C + C * R)
    nb, vmem_limit = _pick_batch_and_vmem(N, R, L, x.dtype.itemsize, weight_bytes)
    grid = (pl.cdiv(N, nb),)

    # TODO(synk): a single image whose (C*HW) slab exceeds the VMEM budget (not a
    # MobileNetV3 SE shape) would need a two-pass pool-then-scale variant.

    kernel = functools.partial(_se_kernel, k=k)
    out = pl.pallas_call(
        kernel,
        out_shape=jax.ShapeDtypeStruct((N, R, L), x.dtype),
        grid_spec=pltpu.PrefetchScalarGridSpec(
            num_scalar_prefetch=0,
            grid=grid,
            in_specs=[
                pl.BlockSpec((nb, R, L), lambda i: (i, 0, 0)),     # activations
                pl.BlockSpec((R, E), lambda i: (0, 0)),            # folded conv1 weight
                pl.BlockSpec((1, E), lambda i: (0, 0)),            # folded BN bias
                pl.BlockSpec((E, C), lambda i: (0, 0)),            # conv2 weight
                pl.BlockSpec((C, R), lambda i: (0, 0)),            # gate expansion
            ],
            out_specs=pl.BlockSpec((nb, R, L), lambda i: (i, 0, 0)),
        ),
        compiler_params=pltpu.CompilerParams(
            dimension_semantics=("parallel",),
            vmem_limit_bytes=vmem_limit,
        ),
    )(x3, w1f, bias, w2t, expand)
    return out.reshape(N, C, H, W)


def se_reference(x, w1, bn_scale, bn_bias, w2):
    """Pure-JAX reference of the same forward pass."""
    pooled = jnp.mean(x.astype(jnp.float32), axis=(2, 3))          # (N, C)
    h = pooled @ w1.astype(jnp.float32).T                          # (N, E)
    h = h * jnp.reshape(bn_scale, (-1,)) + jnp.reshape(bn_bias, (-1,))
    h = jnp.maximum(h, 0.0)
    y = h @ w2.astype(jnp.float32).T                               # (N, C)
    gate = jnp.clip(y / 6.0 + 0.5, 0.0, 1.0)
    return (x.astype(jnp.float32) * gate[:, :, None, None]).astype(x.dtype)


if __name__ == "__main__":
    key = jax.random.PRNGKey(0)
    k_x, k_w1, k_w2, k_g, k_b, k_m, k_v = jax.random.split(key, 7)

    # Module config: in_chans=4, reduction=4 -> expand_size = max(4 // 4, 8) = 8.
    N, C, H, W = 2, 4, 16, 16
    E = max(C // 4, 8)

    x = jax.random.normal(k_x, (N, C, H, W), dtype=jnp.float32)

    # 1x1 conv weights (bias=False), trailing 1x1 kernel dims squeezed.
    w1 = 0.1 * jax.random.normal(k_w1, (E, C), dtype=jnp.float32)  # Conv2d(C, E, 1, bias=False)
    w2 = 0.1 * jax.random.normal(k_w2, (C, E), dtype=jnp.float32)  # Conv2d(E, C, 1, bias=False)

    # BatchNorm2d(E) eval-mode params, folded to per-channel scale & bias.
    gamma = 1.0 + 0.05 * jax.random.normal(k_g, (E,), dtype=jnp.float32)
    beta = 0.05 * jax.random.normal(k_b, (E,), dtype=jnp.float32)
    running_mean = 0.05 * jax.random.normal(k_m, (E,), dtype=jnp.float32)
    running_var = 1.0 + 0.05 * jax.nn.softplus(jax.random.normal(k_v, (E,), dtype=jnp.float32))
    eps = 1e-5
    bn_scale = (gamma / jnp.sqrt(running_var + eps)).reshape(E, 1)
    bn_bias = (beta - running_mean * bn_scale[:, 0]).reshape(E, 1)

    out = se_module(x, w1, bn_scale, bn_bias, w2)
    jax.block_until_ready(out)

    ref = se_reference(x, w1, bn_scale, bn_bias, w2)
    assert out.shape == x.shape and out.dtype == x.dtype
    # Tolerance leaves margin for MXU f32 matmul pass decomposition.
    assert jnp.allclose(out, ref, atol=1e-4, rtol=1e-4), "mismatch vs reference"

    print("KERNEL_OK")
</pallas_src>

<mosaic_0001>
module attributes {stable_mosaic.version = 11 : i64} {
  func.func @_se_kernel(%arg0: i32, %arg1: memref<1x8x128xf32, #tpu.memory_space<vmem>>, %arg2: memref<8x8xf32, #tpu.memory_space<vmem>>, %arg3: memref<1x8xf32, #tpu.memory_space<vmem>>, %arg4: memref<8x4xf32, #tpu.memory_space<vmem>>, %arg5: memref<4x8xf32, #tpu.memory_space<vmem>>, %arg6: memref<1x8x128xf32, #tpu.memory_space<vmem>>) attributes {dimension_semantics = [#tpu.dimension_semantics<parallel>], iteration_bounds = array<i64: 2>, scalar_prefetch = 0 : i64, scratch_operands = 0 : i64, tpu.core_type = #tpu.core_type<tc>, window_params = [{transform_indices = @transform_0, window_bounds = array<i64: 1, 8, 128>}, {pipeline_mode = #tpu.pipeline_mode<synchronous>, transform_indices = @transform_1, window_bounds = array<i64: 8, 8>}, {pipeline_mode = #tpu.pipeline_mode<synchronous>, transform_indices = @transform_2, window_bounds = array<i64: 1, 8>}, {pipeline_mode = #tpu.pipeline_mode<synchronous>, transform_indices = @transform_3, window_bounds = array<i64: 8, 4>}, {pipeline_mode = #tpu.pipeline_mode<synchronous>, transform_indices = @transform_4, window_bounds = array<i64: 4, 8>}, {transform_indices = @transform_5, window_bounds = array<i64: 1, 8, 128>}]} {
    %c0 = arith.constant 0 : index
    %c0_0 = arith.constant 0 : index
    %c0_1 = arith.constant 0 : index
    %0 = vector.load %arg1[%c0, %c0_0, %c0_1] : memref<1x8x128xf32, #tpu.memory_space<vmem>>, vector<1x8x128xf32>
    %cst = arith.constant dense<0.000000e+00> : vector<1x8xf32>
    %1 = vector.multi_reduction <add>, %0, %cst [2] : vector<1x8x128xf32> to vector<1x8xf32>
    %c0_2 = arith.constant 0 : index
    %c0_3 = arith.constant 0 : index
    %2 = vector.load %arg2[%c0_2, %c0_3] : memref<8x8xf32, #tpu.memory_space<vmem>>, vector<8x8xf32>
    %cst_4 = arith.constant dense<0.000000e+00> : vector<1x8xf32>
    %3 = tpu.matmul %1, %2, %cst_4 {dimension_numbers = #tpu.dot_dimension_numbers<[1], [0], [0], [1], [0, 0, 1, 1], [], []>} : vector<1x8xf32>, vector<8x8xf32>, vector<1x8xf32> -> vector<1x8xf32>
    %c0_5 = arith.constant 0 : index
    %c0_6 = arith.constant 0 : index
    %4 = vector.load %arg3[%c0_5, %c0_6] : memref<1x8xf32, #tpu.memory_space<vmem>>, vector<1x8xf32>
    %5 = arith.addf %3, %4 : vector<1x8xf32>
    %cst_7 = arith.constant 0.000000e+00 : f32
    %6 = vector.broadcast %cst_7 : f32 to vector<1x8xf32>
    %7 = arith.maximumf %5, %6 : vector<1x8xf32>
    %c0_8 = arith.constant 0 : index
    %c0_9 = arith.constant 0 : index
    %8 = vector.load %arg4[%c0_8, %c0_9] : memref<8x4xf32, #tpu.memory_space<vmem>>, vector<8x4xf32>
    %cst_10 = arith.constant dense<0.000000e+00> : vector<1x4xf32>
    %9 = tpu.matmul %7, %8, %cst_10 {dimension_numbers = #tpu.dot_dimension_numbers<[1], [0], [0], [1], [0, 0, 1, 1], [], []>} : vector<1x8xf32>, vector<8x4xf32>, vector<1x4xf32> -> vector<1x4xf32>
    %cst_11 = arith.constant 0.166666672 : f32
    %10 = vector.broadcast %cst_11 : f32 to vector<1x4xf32>
    %11 = arith.mulf %9, %10 : vector<1x4xf32>
    %cst_12 = arith.constant 5.000000e-01 : f32
    %12 = vector.broadcast %cst_12 : f32 to vector<1x4xf32>
    %13 = arith.addf %11, %12 : vector<1x4xf32>
    %cst_13 = arith.constant 0.000000e+00 : f32
    %cst_14 = arith.constant 1.000000e+00 : f32
    %14 = vector.broadcast %cst_13 : f32 to vector<1x4xf32>
    %15 = arith.maximumf %14, %13 : vector<1x4xf32>
    %16 = vector.broadcast %cst_14 : f32 to vector<1x4xf32>
    %17 = arith.minimumf %16, %15 : vector<1x4xf32>
    %c0_15 = arith.constant 0 : index
    %c0_16 = arith.constant 0 : index
    %18 = vector.load %arg5[%c0_15, %c0_16] : memref<4x8xf32, #tpu.memory_space<vmem>>, vector<4x8xf32>
    %cst_17 = arith.constant dense<0.000000e+00> : vector<1x8xf32>
    %19 = tpu.matmul %17, %18, %cst_17 {dimension_numbers = #tpu.dot_dimension_numbers<[1], [0], [0], [1], [0, 0, 1, 1], [], []>} : vector<1x4xf32>, vector<4x8xf32>, vector<1x8xf32> -> vector<1x8xf32>
    %20 = vector.shape_cast %19 : vector<1x8xf32> to vector<1x8x1xf32>
    %21 = vector.broadcast %20 : vector<1x8x1xf32> to vector<1x8x128xf32>
    %22 = arith.mulf %0, %21 : vector<1x8x128xf32>
    %c0_18 = arith.constant 0 : index
    %c0_19 = arith.constant 0 : index
    %c0_20 = arith.constant 0 : index
    %23 = vector.load %arg6[%c0_18, %c0_19, %c0_20] : memref<1x8x128xf32, #tpu.memory_space<vmem>>, vector<1x8x128xf32>
    tpu.vector_store %arg6[%c0_18, %c0_19, %c0_20], %22 {strides = array<i32>} : memref<1x8x128xf32, #tpu.memory_space<vmem>>, vector<1x8x128xf32>,
    return
  }
  func.func @transform_0(%arg0: i32) -> (i32, i32, i32) {
    %c0_i32 = arith.constant 0 : i32
    %c0_i32_0 = arith.constant 0 : i32
    %c0_i32_1 = arith.constant 0 : i32
    return %arg0, %c0_i32, %c0_i32_0 : i32, i32, i32
  }
  func.func @transform_1(%arg0: i32) -> (i32, i32) {
    %c0_i32 = arith.constant 0 : i32
    %c0_i32_0 = arith.constant 0 : i32
    %c0_i32_1 = arith.constant 0 : i32
    return %c0_i32, %c0_i32_0 : i32, i32
  }
  func.func @transform_2(%arg0: i32) -> (i32, i32) {
    %c0_i32 = arith.constant 0 : i32
    %c0_i32_0 = arith.constant 0 : i32
    %c0_i32_1 = arith.constant 0 : i32
    return %c0_i32, %c0_i32_0 : i32, i32
  }
  func.func @transform_3(%arg0: i32) -> (i32, i32) {
    %c0_i32 = arith.constant 0 : i32
    %c0_i32_0 = arith.constant 0 : i32
    %c0_i32_1 = arith.constant 0 : i32
    return %c0_i32, %c0_i32_0 : i32, i32
  }
  func.func @transform_4(%arg0: i32) -> (i32, i32) {
    %c0_i32 = arith.constant 0 : i32
    %c0_i32_0 = arith.constant 0 : i32
    %c0_i32_1 = arith.constant 0 : i32
    return %c0_i32, %c0_i32_0 : i32, i32
  }
  func.func @transform_5(%arg0: i32) -> (i32, i32, i32) {
    %c0_i32 = arith.constant 0 : i32
    %c0_i32_0 = arith.constant 0 : i32
    %c0_i32_1 = arith.constant 0 : i32
    return %arg0, %c0_i32, %c0_i32_0 : i32, i32, i32
  }
}

</mosaic_0001>

<llo_original>
// kernel: tpu_custom_call.1
$region0: #{tpu_custom_call.1}
  #allocation0 [shape = 'u32[]', space=smem, size = 0x4, offset = 0x4, fixed_abs, tag = 'smem constant byte address 0x4 - core index']
  #allocation1 [shape = 'u32[144,128]{1,0:T(1,128)}', space=vmem, size = 0x12000, scoped, tag = 'internal scratch']
  %s0 = inlined_call_operand.hbm [shape: f32[2,8,128], index: 0, kind: input, shape index: {}]
  %s1 = inlined_call_operand.vmem [shape: f32[8,8], index: 1, kind: input, shape index: {}]
  %s2 = inlined_call_operand.vmem [shape: f32[1,8], index: 2, kind: input, shape index: {}]
  %s3 = inlined_call_operand.vmem [shape: f32[8,4], index: 3, kind: input, shape index: {}]
  %s4 = inlined_call_operand.vmem [shape: f32[4,8], index: 4, kind: input, shape index: {}]
  %s5 = inlined_call_operand.hbm [shape: f32[2,8,128], index: 5, kind: output, shape index: {}]
  %s6 = sld [smem:[#allocation0]]
  $region57: #{tpu_custom_call.1} parent=0
    _
  %s8 = ssub.s32 1, %s6
  %s9 = scalar_select 0, %s8, %s6
  $region1: #{tpu_custom_call.1} parent=0
    #allocation2 [shape = 'u8[8192]{0}', space=vmem, size = 0x2000, scoped, tag = 'input window, operand 0']
    #allocation3 [shape = 's32[2]{0}', space=sflag, size = 0x8, scoped, tag = 'scoped memory for tpu_custom_call.1']
    #allocation4 [shape = 's32[2]{0}', space=sflag, size = 0x8, scoped, tag = 'scoped memory for tpu_custom_call.1']
    #allocation5 [shape = 'u8[8192]{0}', space=vmem, size = 0x2000, scoped, tag = 'output window, operand 0']
    %10 = vsyncpa [#allocation3], 0
    %s11 = scalar_lea.sflag [#allocation3], 1
    %12 = vsyncpa %s11, 0
    %13 = vsyncpa [#allocation4], 0
    %s14 = scalar_lea.sflag [#allocation4], 1
    %15 = vsyncpa %s14, 0
    loop: start=0, step=1, limit=4
    $region2: #{tpu_custom_call.1} parent=1 // loop_pre_header
      _
    $region3: #{tpu_custom_call.1} parent=1 // loop_header
      %s17 = sphi 0, %s21
      %p18 = scmp.ge.s32.totalorder %s17, 4
      %s27 = sphi 0, %s29
      %s30 = sphi 0, %s27
      %s31 = sphi 0, %s30
      %s47 = sphi 0, %s31
      %s51 = sphi 0, %s51
      %s53 = sphi 0, %s51
      %s54 = sphi 0, %s53
      %s68 = sphi 0, %s54
      %s72 = sphi 0, %s72
      %s74 = sphi 0, %s72
      %s75 = sphi 0, %s74
      %s89 = sphi 0, %s75
      %s93 = sphi 0, %s93
      %s95 = sphi 0, %s93
      %s96 = sphi 0, %s95
      %s110 = sphi 0, %s96
      %s114 = sphi 0, %s114
      %s116 = sphi 0, %s114
      %s117 = sphi 0, %s116
      %s131 = sphi 0, %s117
      %s137 = sphi 0, %s139
      %s140 = sphi 0, %s137
      %s141 = sphi 0, %s140
      %s157 = sphi 0, %s141
    $region4: #{tpu_custom_call.1} parent=1 // loop_header_branch
      %20 = sbr.rel (%p18) target = $region8
    $region5: #{tpu_custom_call.1} parent=1 // loop_body
      %s22 = ssub.s32 %s17, 1
      %s23 = ssub.s32 %s17, 2
      %s24 = sadd.s32 %s17, 1
      %s25 = ssub.s32 %s17, %s24
      %p26 = scmp.eq.s32.totalorder %s25, 0
      %s28 = sadd.s32 %s27, 1
      %s29 = scalar_select %p26, %s27, %s28
      %p32 = pneg %p26
      %p33 = scmp.eq.s32.totalorder %s17, 1
      %p34 = por %p32, %p33
      %p35 = scmp.ne.s32.totalorder %s27, %s30
      %p36 = scmp.eq.s32.totalorder %s17, 0
      %p37 = por %p35, %p36
      %p38 = scmp.ne.s32.totalorder %s27, %s30
      %p39 = scmp.eq.s32.totalorder %s22, 1
      %p40 = por %p38, %p39
      %p41 = scmp.ne.s32.totalorder %s30, %s31
      %p42 = scmp.eq.s32.totalorder %s22, 0
      %p43 = por %p41, %p42
      %p44 = scmp.ne.s32.totalorder %s30, %s31
      %p45 = scmp.eq.s32.totalorder %s23, 1
      %p46 = por %p44, %p45
      %p48 = scmp.ne.s32.totalorder %s31, %s47
      %p49 = scmp.eq.s32.totalorder %s23, 0
      %p50 = por %p48, %p49
      %s52 = sadd.s32 %s51, 1
      %p55 = scmp.eq.s32.totalorder %s17, 1
      %p56 = scmp.ne.s32.totalorder %s51, %s53
      %p57 = scmp.eq.s32.totalorder %s17, 0
      %p58 = por %p56, %p57
      %p59 = scmp.ne.s32.totalorder %s51, %s53
      %p60 = scmp.eq.s32.totalorder %s22, 1
      %p61 = por %p59, %p60
      %p62 = scmp.ne.s32.totalorder %s53, %s54
      %p63 = scmp.eq.s32.totalorder %s22, 0
      %p64 = por %p62, %p63
      %p65 = scmp.ne.s32.totalorder %s53, %s54
      %p66 = scmp.eq.s32.totalorder %s23, 1
      %p67 = por %p65, %p66
      %p69 = scmp.ne.s32.totalorder %s54, %s68
      %p70 = scmp.eq.s32.totalorder %s23, 0
      %p71 = por %p69, %p70
      %s73 = sadd.s32 %s72, 1
      %p76 = scmp.eq.s32.totalorder %s17, 1
      %p77 = scmp.ne.s32.totalorder %s72, %s74
      %p78 = scmp.eq.s32.totalorder %s17, 0
      %p79 = por %p77, %p78
      %p80 = scmp.ne.s32.totalorder %s72, %s74
      %p81 = scmp.eq.s32.totalorder %s22, 1
      %p82 = por %p80, %p81
      %p83 = scmp.ne.s32.totalorder %s74, %s75
      %p84 = scmp.eq.s32.totalorder %s22, 0
      %p85 = por %p83, %p84
      %p86 = scmp.ne.s32.totalorder %s74, %s75
      %p87 = scmp.eq.s32.totalorder %s23, 1
      %p88 = por %p86, %p87
      %p90 = scmp.ne.s32.totalorder %s75, %s89
      %p91 = scmp.eq.s32.totalorder %s23, 0
      %p92 = por %p90, %p91
      %s94 = sadd.s32 %s93, 1
      %p97 = scmp.eq.s32.totalorder %s17, 1
      %p98 = scmp.ne.s32.totalorder %s93, %s95
      %p99 = scmp.eq.s32.totalorder %s17, 0
      %p100 = por %p98, %p99
      %p101 = scmp.ne.s32.totalorder %s93, %s95
      %p102 = scmp.eq.s32.totalorder %s22, 1
      %p103 = por %p101, %p102
      %p104 = scmp.ne.s32.totalorder %s95, %s96
      %p105 = scmp.eq.s32.totalorder %s22, 0
      %p106 = por %p104, %p105
      %p107 = scmp.ne.s32.totalorder %s95, %s96
      %p108 = scmp.eq.s32.totalorder %s23, 1
      %p109 = por %p107, %p108
      %p111 = scmp.ne.s32.totalorder %s96, %s110
      %p112 = scmp.eq.s32.totalorder %s23, 0
      %p113 = por %p111, %p112
      %s115 = sadd.s32 %s114, 1
      %p118 = scmp.eq.s32.totalorder %s17, 1
      %p119 = scmp.ne.s32.totalorder %s114, %s116
      %p120 = scmp.eq.s32.totalorder %s17, 0
      %p121 = por %p119, %p120
      %p122 = scmp.ne.s32.totalorder %s114, %s116
      %p123 = scmp.eq.s32.totalorder %s22, 1
      %p124 = por %p122, %p123
      %p125 = scmp.ne.s32.totalorder %s116, %s117
      %p126 = scmp.eq.s32.totalorder %s22, 0
      %p127 = por %p125, %p126
      %p128 = scmp.ne.s32.totalorder %s116, %s117
      %p129 = scmp.eq.s32.totalorder %s23, 1
      %p130 = por %p128, %p129
      %p132 = scmp.ne.s32.totalorder %s117, %s131
      %p133 = scmp.eq.s32.totalorder %s23, 0
      %p134 = por %p132, %p133
      %s135 = ssub.s32 %s17, %s24
      %p136 = scmp.eq.s32.totalorder %s135, 0
      %s138 = sadd.s32 %s137, 1
      %s139 = scalar_select %p136, %s137, %s138
      %p142 = pneg %p136
      %p143 = scmp.eq.s32.totalorder %s17, 1
      %p144 = por %p142, %p143
      %p145 = scmp.ne.s32.totalorder %s137, %s140
      %p146 = scmp.eq.s32.totalorder %s17, 0
      %p147 = por %p145, %p146
      %p148 = scmp.ne.s32.totalorder %s137, %s140
      %p149 = scmp.eq.s32.totalorder %s22, 1
      %p150 = por %p148, %p149
      %p151 = scmp.ne.s32.totalorder %s140, %s141
      %p152 = scmp.eq.s32.totalorder %s22, 0
      %p153 = por %p151, %p152
      %p154 = scmp.ne.s32.totalorder %s140, %s141
      %p155 = scmp.eq.s32.totalorder %s23, 1
      %p156 = por %p154, %p155
      %p158 = scmp.ne.s32.totalorder %s141, %s157
      %p159 = scmp.eq.s32.totalorder %s23, 0
      %p160 = por %p158, %p159
      %p161 = scmp.le.s32.totalorder 1, %s17
      %p162 = scmp.lt.s32.totalorder %s17, 3
      %p163 = pnand %p161, %p162
      %p164 = pneg %p163
      // Predicated region
      $region9: #{tpu_custom_call.1} parent=5 // pred_check
        _
      $region10: #{tpu_custom_call.1} parent=5 // pred_check_branch
        %166 = sbr.rel (%p163) target = $region12
      $region11: #{tpu_custom_call.1} parent=5 // pred_region
        %s167 = ssub.s32 %s17, 1
        // Predicated region
        $region13: #{tpu_custom_call.1} parent=11 // pred_check
          %p168 = pneg %p64
        $region14: #{tpu_custom_call.1} parent=11 // pred_check_branch
          %170 = sbr.rel (%p168) target = $region16
        $region15: #{tpu_custom_call.1} parent=11 // pred_region
          _
        $region16: #{tpu_custom_call.1} parent=11 // pred_fallthru
          _
        // Predicated region
        $region17: #{tpu_custom_call.1} parent=11 // pred_check
          %p171 = pneg %p85
        $region18: #{tpu_custom_call.1} parent=11 // pred_check_branch
          %173 = sbr.rel (%p171) target = $region20
        $region19: #{tpu_custom_call.1} parent=11 // pred_region
          _
        $region20: #{tpu_custom_call.1} parent=11 // pred_fallthru
          _
        // Predicated region
        $region21: #{tpu_custom_call.1} parent=11 // pred_check
          %p174 = pneg %p106
        $region22: #{tpu_custom_call.1} parent=11 // pred_check_branch
          %176 = sbr.rel (%p174) target = $region24
        $region23: #{tpu_custom_call.1} parent=11 // pred_region
          _
        $region24: #{tpu_custom_call.1} parent=11 // pred_fallthru
          _
        // Predicated region
        $region25: #{tpu_custom_call.1} parent=11 // pred_check
          %p177 = pneg %p127
        $region26: #{tpu_custom_call.1} parent=11 // pred_check_branch
          %179 = sbr.rel (%p177) target = $region28
        $region27: #{tpu_custom_call.1} parent=11 // pred_region
          _
        $region28: #{tpu_custom_call.1} parent=11 // pred_fallthru
          _
      $region12: #{tpu_custom_call.1} parent=5 // pred_fallthru
        _
      %p180 = scmp.lt.s32.totalorder %s17, 2
      // Predicated region
      $region29: #{tpu_custom_call.1} parent=5 // pred_check
        %p181 = pneg %p180
      $region30: #{tpu_custom_call.1} parent=5 // pred_check_branch
        %183 = sbr.rel (%p181) target = $region32
      $region31: #{tpu_custom_call.1} parent=5 // pred_region
        // Predicated region
        $region33: #{tpu_custom_call.1} parent=31 // pred_check
          %p184 = pneg %p37
        $region34: #{tpu_custom_call.1} parent=31 // pred_check_branch
          %186 = sbr.rel (%p184) target = $region36
        $region35: #{tpu_custom_call.1} parent=31 // pred_region
          %s187 = sand.u32 %s27, 1
          %s188 = scalar_lea.sflag [#allocation3], %s187
          %s189 = sand.u32 %s27, 1
          %s190 = smul.addr %s189, 8
          %s191 = scalar_lea.vmem [#allocation2], %s190
          %s193 = ssub.s32 128, 128
          %194 = vsyncadd %s188, %s193
          %s195 = smul.addr %s17, 128
          %s196 = scalar_lea.hbm %s0, %s195
          %s198 = sshll.u32 %s191, 4
          %s199 = int_to_ptr.vmem [resolvable:$true] %s198
          %201 = dma.hbm_to_vmem [thread:$0]  %s196, 128, %s199, %s188
        $region36: #{tpu_custom_call.1} parent=31 // pred_fallthru
          _
      $region32: #{tpu_custom_call.1} parent=5 // pred_fallthru
        _
      %p202 = scmp.le.s32.totalorder 1, %s17
      %p203 = scmp.lt.s32.totalorder %s17, 3
      %p204 = pnand %p202, %p203
      %p205 = pneg %p204
      // Predicated region
      $region37: #{tpu_custom_call.1} parent=5 // pred_check
        _
      $region38: #{tpu_custom_call.1} parent=5 // pred_check_branch
        %207 = sbr.rel (%p204) target = $region40
      $region39: #{tpu_custom_call.1} parent=5 // pred_region
        %s208 = ssub.s32 %s17, 1
        %s209 = sand.u32 %s30, 1
        %s210 = scalar_lea.sflag [#allocation3], %s209
        %s211 = sand.u32 %s30, 1
        %s212 = smul.addr %s211, 8
        %s213 = scalar_lea.vmem [#allocation2], %s212
        // Predicated region
        $region41: #{tpu_custom_call.1} parent=39 // pred_check
          %p214 = pneg %p43
        $region42: #{tpu_custom_call.1} parent=39 // pred_check_branch
          %216 = sbr.rel (%p214) target = $region44
        $region43: #{tpu_custom_call.1} parent=39 // pred_region
          %217 = dma.done %s210, 128
        $region44: #{tpu_custom_call.1} parent=39 // pred_fallthru
          _
        %s218 = sand.u32 %s30, 1
        %s219 = scalar_lea.sflag [#allocation3], %s218
        %s220 = sand.u32 %s30, 1
        %s221 = smul.addr %s220, 8
        %s222 = scalar_lea.vmem [#allocation2], %s221
        %p223 = pneg %p43
        %p224 = pneg %p40
        %p225 = pneg %p64
        %p226 = pneg %p61
        %p227 = pneg %p85
        %p228 = pneg %p82
        %p229 = pneg %p106
        %p230 = pneg %p103
        %p231 = pneg %p127
        %p232 = pneg %p124
        %p233 = pneg %p153
        %p234 = pneg %p150
        %s235 = sand.u32 %s140, 1
        %s236 = scalar_lea.sflag [#allocation4], %s235
        %s237 = sand.u32 %s140, 1
        %s238 = smul.addr %s237, 8
        %s239 = scalar_lea.vmem [#allocation5], %s238
        %v240 = vld [vmem:[%s213] sm:$0xff]
        %241 = vadd.xlane.f32.xlu0 %v240
        %v242 = vpop.xlane.xlu0 %241
        %v243 = vld [vmem:[%s1] sm:$0xff]
        %v244 = vld [vmem:[%s2] sm:$0x1]
        %v246 = vlaneseq
        %v247 = vand.u32 %v246, 127
        %v248 = vlaneseq
        %v249 = vshrl.u32 %v248, 7
        %v250 = vsub.s32 %v247, %v249
        %v251 = vrot.slane %v242, %v250
        %vm252 = vcmask 64512
        %v253 = vsel %vm252, %v251, 0
        %255 = vmatprep.subr.mxu0 0.0
        %256 = vmatpush1.msra.mxu0 %v243
        %257 = vmatprep.subr.mxu0 0.0
        %258 = vmatpush1.msra.mxu0 0.0
        %259 = vmatprep.subr.mxu0 0.0
        %260 = vmatpush1.msra.mxu0 0.0
        %261 = vmatprep.subr.mxu0 0.0
        %262 = vmatpush1.msra.mxu0 0.0
        %263 = vmatprep.subr.mxu0 0.0
        %264 = vmatpush1.msra.mxu0 0.0
        %265 = vmatprep.subr.mxu0 0.0
        %266 = vmatpush1.msra.mxu0 0.0
        %267 = vmatprep.subr.mxu0 0.0
        %268 = vmatpush1.msra.mxu0 0.0
        %269 = vmatprep.subr.mxu0 0.0
        %270 = vmatpush1.msra.mxu0 0.0
        %271 = vmatprep.subr.mxu0 0.0
        %272 = vmatpush1.msra.mxu0 0.0
        %273 = vmatprep.subr.mxu0 0.0
        %274 = vmatpush1.msra.mxu0 0.0
        %275 = vmatprep.subr.mxu0 0.0
        %276 = vmatpush1.msra.mxu0 0.0
        %277 = vmatprep.subr.mxu0 0.0
        %278 = vmatpush1.msra.mxu0 0.0
        %279 = vmatprep.subr.mxu0 0.0
        %280 = vmatpush1.msra.mxu0 0.0
        %281 = vmatprep.subr.mxu0 0.0
        %282 = vmatpush1.msra.mxu0 0.0
        %283 = vmatprep.subr.mxu0 0.0
        %284 = vmatpush1.msra.mxu0 0.0
        %285 = vmatprep.subr.mxu0 0.0
        %286 = vmatpush1.msra.mxu0 0.0
        %287 = vmatprep.subr.mxu0 0.0
        %288 = vmatpush1.msra.mxu0 0.0
        %289 = vmatprep.subr.mxu0 0.0
        %290 = vmatpush1.msra.mxu0 0.0
        %291 = vmatprep.subr.mxu0 0.0
        %292 = vmatpush1.msra.mxu0 0.0
        %293 = vmatprep.subr.mxu0 0.0
        %294 = vmatpush1.msra.mxu0 0.0
        %295 = vmatprep.subr.mxu0 0.0
        %296 = vmatpush1.msra.mxu0 0.0
        %297 = vmatprep.subr.mxu0 0.0
        %298 = vmatpush1.msra.mxu0 0.0
        %299 = vmatprep.subr.mxu0 0.0
        %300 = vmatpush1.msra.mxu0 0.0
        %301 = vmatprep.subr.mxu0 0.0
        %302 = vmatpush1.msra.mxu0 0.0
        %303 = vmatprep.subr.mxu0 0.0
        %304 = vmatpush1.msra.mxu0 0.0
        %305 = vmatprep.subr.mxu0 0.0
        %306 = vmatpush1.msra.mxu0 0.0
        %307 = vmatprep.subr.mxu0 0.0
        %308 = vmatpush1.msra.mxu0 0.0
        %309 = vmatprep.subr.mxu0 0.0
        %310 = vmatpush1.msra.mxu0 0.0
        %311 = vmatprep.subr.mxu0 0.0
        %312 = vmatpush1.msra.mxu0 0.0
        %313 = vmatprep.subr.mxu0 0.0
        %314 = vmatpush1.msra.mxu0 0.0
        %315 = vmatprep.subr.mxu0 0.0
        %316 = vmatpush1.msra.mxu0 0.0
        %317 = vmatprep.subr.mxu0 0.0
        %318 = vmatpush1.msra.mxu0 0.0
        %319 = vmatprep.mubr.f32.mxu0 0.0
        %320 = vmatmul.mubr.f32.gmra.mrb[0].mxu0 %v253
        %v321 = vpop.f32.mrb[0].mxu0
        %v322 = vadd.f32 %v244, %v321
        %v323 = vpop.f32.mrb[0].mxu0
        %324 = vdwg.mxu0
        %v325 = vmax.f32 %v322, 0.0
        %v326 = vld [vmem:[%s3] sm:$0xff]
        %v328 = vsel %vm252, %v325, 0
        %330 = vmatprep.subr.mxu0 0.0
        %331 = vmatpush1.msra.mxu0 %v326
        %332 = vmatprep.subr.mxu0 0.0
        %333 = vmatpush1.msra.mxu0 0.0
        %334 = vmatprep.subr.mxu0 0.0
        %335 = vmatpush1.msra.mxu0 0.0
        %336 = vmatprep.subr.mxu0 0.0
        %337 = vmatpush1.msra.mxu0 0.0
        %338 = vmatprep.subr.mxu0 0.0
        %339 = vmatpush1.msra.mxu0 0.0
        %340 = vmatprep.subr.mxu0 0.0
        %341 = vmatpush1.msra.mxu0 0.0
        %342 = vmatprep.subr.mxu0 0.0
        %343 = vmatpush1.msra.mxu0 0.0
        %344 = vmatprep.subr.mxu0 0.0
        %345 = vmatpush1.msra.mxu0 0.0
        %346 = vmatprep.subr.mxu0 0.0
        %347 = vmatpush1.msra.mxu0 0.0
        %348 = vmatprep.subr.mxu0 0.0
        %349 = vmatpush1.msra.mxu0 0.0
        %350 = vmatprep.subr.mxu0 0.0
        %351 = vmatpush1.msra.mxu0 0.0
        %352 = vmatprep.subr.mxu0 0.0
        %353 = vmatpush1.msra.mxu0 0.0
        %354 = vmatprep.subr.mxu0 0.0
        %355 = vmatpush1.msra.mxu0 0.0
        %356 = vmatprep.subr.mxu0 0.0
        %357 = vmatpush1.msra.mxu0 0.0
        %358 = vmatprep.subr.mxu0 0.0
        %359 = vmatpush1.msra.mxu0 0.0
        %360 = vmatprep.subr.mxu0 0.0
        %361 = vmatpush1.msra.mxu0 0.0
        %362 = vmatprep.subr.mxu0 0.0
        %363 = vmatpush1.msra.mxu0 0.0
        %364 = vmatprep.subr.mxu0 0.0
        %365 = vmatpush1.msra.mxu0 0.0
        %366 = vmatprep.subr.mxu0 0.0
        %367 = vmatpush1.msra.mxu0 0.0
        %368 = vmatprep.subr.mxu0 0.0
        %369 = vmatpush1.msra.mxu0 0.0
        %370 = vmatprep.subr.mxu0 0.0
        %371 = vmatpush1.msra.mxu0 0.0
        %372 = vmatprep.subr.mxu0 0.0
        %373 = vmatpush1.msra.mxu0 0.0
        %374 = vmatprep.subr.mxu0 0.0
        %375 = vmatpush1.msra.mxu0 0.0
        %376 = vmatprep.subr.mxu0 0.0
        %377 = vmatpush1.msra.mxu0 0.0
        %378 = vmatprep.subr.mxu0 0.0
        %379 = vmatpush1.msra.mxu0 0.0
        %380 = vmatprep.subr.mxu0 0.0
        %381 = vmatpush1.msra.mxu0 0.0
        %382 = vmatprep.subr.mxu0 0.0
        %383 = vmatpush1.msra.mxu0 0.0
        %384 = vmatprep.subr.mxu0 0.0
        %385 = vmatpush1.msra.mxu0 0.0
        %386 = vmatprep.subr.mxu0 0.0
        %387 = vmatpush1.msra.mxu0 0.0
        %388 = vmatprep.subr.mxu0 0.0
        %389 = vmatpush1.msra.mxu0 0.0
        %390 = vmatprep.subr.mxu0 0.0
        %391 = vmatpush1.msra.mxu0 0.0
        %392 = vmatprep.subr.mxu0 0.0
        %393 = vmatpush1.msra.mxu0 0.0
        %394 = vmatprep.mubr.f32.mxu0 0.0
        %395 = vmatmul.mubr.f32.gmra.mrb[0].mxu0 %v328
        %v396 = vpop.f32.mrb[0].mxu0
        %v397 = vadd.f32 0.0, %v396
        %v398 = vpop.f32.mrb[0].mxu0
        %399 = vdwg.mxu0
        %v400 = vmul.f32 %v397, 0.16666667
        %v401 = vadd.f32 %v400, 0.5
        %v402 = vmax.f32 %v401, 0.0
        %v403 = vmin.f32 %v402, 1.0
        %v404 = vld [vmem:[%s4] sm:$0xf]
        %vm405 = vcmask 31744
        %v407 = vsel %vm405, %v403, 0
        %vm409 = vcmask 1043456
        %v411 = vsel %vm409, %v404, 0
        %413 = vmatprep.subr.mxu0 0.0
        %414 = vmatpush1.msra.mxu0 %v411
        %415 = vmatprep.subr.mxu0 0.0
        %416 = vmatpush1.msra.mxu0 0.0
        %417 = vmatprep.subr.mxu0 0.0
        %418 = vmatpush1.msra.mxu0 0.0
        %419 = vmatprep.subr.mxu0 0.0
        %420 = vmatpush1.msra.mxu0 0.0
        %421 = vmatprep.subr.mxu0 0.0
        %422 = vmatpush1.msra.mxu0 0.0
        %423 = vmatprep.subr.mxu0 0.0
        %424 = vmatpush1.msra.mxu0 0.0
        %425 = vmatprep.subr.mxu0 0.0
        %426 = vmatpush1.msra.mxu0 0.0
        %427 = vmatprep.subr.mxu0 0.0
        %428 = vmatpush1.msra.mxu0 0.0
        %429 = vmatprep.subr.mxu0 0.0
        %430 = vmatpush1.msra.mxu0 0.0
        %431 = vmatprep.subr.mxu0 0.0
        %432 = vmatpush1.msra.mxu0 0.0
        %433 = vmatprep.subr.mxu0 0.0
        %434 = vmatpush1.msra.mxu0 0.0
        %435 = vmatprep.subr.mxu0 0.0
        %436 = vmatpush1.msra.mxu0 0.0
        %437 = vmatprep.subr.mxu0 0.0
        %438 = vmatpush1.msra.mxu0 0.0
        %439 = vmatprep.subr.mxu0 0.0
        %440 = vmatpush1.msra.mxu0 0.0
        %441 = vmatprep.subr.mxu0 0.0
        %442 = vmatpush1.msra.mxu0 0.0
        %443 = vmatprep.subr.mxu0 0.0
        %444 = vmatpush1.msra.mxu0 0.0
        %445 = vmatprep.subr.mxu0 0.0
        %446 = vmatpush1.msra.mxu0 0.0
        %447 = vmatprep.subr.mxu0 0.0
        %448 = vmatpush1.msra.mxu0 0.0
        %449 = vmatprep.subr.mxu0 0.0
        %450 = vmatpush1.msra.mxu0 0.0
        %451 = vmatprep.subr.mxu0 0.0
        %452 = vmatpush1.msra.mxu0 0.0
        %453 = vmatprep.subr.mxu0 0.0
        %454 = vmatpush1.msra.mxu0 0.0
        %455 = vmatprep.subr.mxu0 0.0
        %456 = vmatpush1.msra.mxu0 0.0
        %457 = vmatprep.subr.mxu0 0.0
        %458 = vmatpush1.msra.mxu0 0.0
        %459 = vmatprep.subr.mxu0 0.0
        %460 = vmatpush1.msra.mxu0 0.0
        %461 = vmatprep.subr.mxu0 0.0
        %462 = vmatpush1.msra.mxu0 0.0
        %463 = vmatprep.subr.mxu0 0.0
        %464 = vmatpush1.msra.mxu0 0.0
        %465 = vmatprep.subr.mxu0 0.0
        %466 = vmatpush1.msra.mxu0 0.0
        %467 = vmatprep.subr.mxu0 0.0
        %468 = vmatpush1.msra.mxu0 0.0
        %469 = vmatprep.subr.mxu0 0.0
        %470 = vmatpush1.msra.mxu0 0.0
        %471 = vmatprep.subr.mxu0 0.0
        %472 = vmatpush1.msra.mxu0 0.0
        %473 = vmatprep.subr.mxu0 0.0
        %474 = vmatpush1.msra.mxu0 0.0
        %475 = vmatprep.subr.mxu0 0.0
        %476 = vmatpush1.msra.mxu0 0.0
        %477 = vmatprep.mubr.f32.mxu0 0.0
        %478 = vmatmul.mubr.f32.gmra.mrb[0].mxu0 %v407
        %v479 = vpop.f32.mrb[0].mxu0
        %v480 = vadd.f32 0.0, %v479
        %v481 = vpop.f32.mrb[0].mxu0
        %482 = vdwg.mxu0
        %v483 = vlaneseq
        %v484 = vshrl.u32 %v483, 7
        %v485 = vsub.s32 0, %v484
        %v486 = vrot.slane %v480, %v485
        %488 = vbcast.lane.b32.xlu0 %v486, 256
        %v489 = vpop.permute.xlu0 %488
        %v490 = vmul.f32 %v240, %v489
        %491 = vst [vmem:[%s239] sm:$0xff] %v490
        %s492 = sand.u32 %s140, 1
        %s493 = scalar_lea.sflag [#allocation4], %s492
        %s494 = sand.u32 %s140, 1
        %s495 = smul.addr %s494, 8
        %s496 = scalar_lea.vmem [#allocation5], %s495
        // Predicated region
        $region45: #{tpu_custom_call.1} parent=39 // pred_check
          %p497 = pneg %p150
        $region46: #{tpu_custom_call.1} parent=39 // pred_check_branch
          %499 = sbr.rel (%p497) target = $region48
        $region47: #{tpu_custom_call.1} parent=39 // pred_region
          %s501 = ssub.s32 128, 128
          %502 = vsyncadd %s493, %s501
          %s503 = smul.addr %s22, 128
          %s504 = scalar_lea.hbm %s5, %s503
          %s506 = sshll.u32 %s496, 4
          %s507 = int_to_ptr.vmem [resolvable:$true] %s506
          %509 = dma.vmem_to_hbm [thread:$0]  %s507, 128, %s504, %s493
        $region48: #{tpu_custom_call.1} parent=39 // pred_fallthru
          _
      $region40: #{tpu_custom_call.1} parent=5 // pred_fallthru
        _
      %p510 = scmp.le.s32.totalorder 2, %s17
      // Predicated region
      $region49: #{tpu_custom_call.1} parent=5 // pred_check
        %p511 = pneg %p510
      $region50: #{tpu_custom_call.1} parent=5 // pred_check_branch
        %513 = sbr.rel (%p511) target = $region52
      $region51: #{tpu_custom_call.1} parent=5 // pred_region
        %s514 = ssub.s32 %s17, 2
        // Predicated region
        $region53: #{tpu_custom_call.1} parent=51 // pred_check
          %p515 = pneg %p156
        $region54: #{tpu_custom_call.1} parent=51 // pred_check_branch
          %517 = sbr.rel (%p515) target = $region56
        $region55: #{tpu_custom_call.1} parent=51 // pred_region
          %s518 = sand.u32 %s141, 1
          %s519 = scalar_lea.sflag [#allocation4], %s518
          %s520 = sand.u32 %s141, 1
          %s521 = smul.addr %s520, 8
          %s522 = scalar_lea.vmem [#allocation5], %s521
          %523 = dma.done %s519, 128
        $region56: #{tpu_custom_call.1} parent=51 // pred_fallthru
          _
      $region52: #{tpu_custom_call.1} parent=5 // pred_fallthru
        _
    $region6: #{tpu_custom_call.1} parent=1 // loop_footer
      %s21 = sadd.s32 1, %s17
    $region7: #{tpu_custom_call.1} parent=1 // loop_footer_branch
      %16 = sbr.rel target = $region3
    $region8: #{tpu_custom_call.1} parent=1 // loop_exit
      _
    %524 = vsyncpa [#allocation3], 1
    %s525 = scalar_lea.sflag [#allocation3], 1
    %526 = vsyncpa %s525, 1
    %527 = vsyncpa [#allocation4], 1
    %s528 = scalar_lea.sflag [#allocation4], 1
    %529 = vsyncpa %s528, 1

</llo_original>
